<compile_context>
chip_gen: v5e
topology: v5e:2x2
jax: 0.10.0
libtpu: 0.0.40
codegen_flags: <defaults>
</compile_context>

<pallas_src>
import functools
import math

import jax
import jax.numpy as jnp
from jax.experimental import pallas as pl
from jax.experimental.pallas import tpu as pltpu

LANES = 128
SUBLANES = 8
_LOG2 = math.log(2.0)
# Largest per-operand row count handled in the single-shot path
# (4096 rows x 128 lanes x 4 B = 2 MiB per f32 operand -> trivially fits VMEM,
#  well under even v7x's smaller scoped-VMEM default).
_SINGLE_SHOT_MAX_ROWS = 4096


def _ceil_div(a, b):
    return -(-a // b)


def _finalize(sum_conf, sum_lab, sum_sp_total, *, n_conf, n_lab, pad_sp_correction):
    """Combine the three global sums into the PNLoss scalar.

    sp_total = softplus(x) + softplus(-x), so
      sum softplus(+x) = (sum sp_total + sum x) / 2
      sum softplus(-x) = (sum sp_total - sum x) / 2
    Zero-padding contributes 0 to sum(conf) and sum(labeled) but 2*ln(2) per padded
    element of `labeled` to sum_sp_total; `pad_sp_correction` (static) removes it.
    Works both in-kernel and as plain XLA in the wrapper.
    """
    sum_sp_total = sum_sp_total - pad_sp_correction
    sum_sp_pos = 0.5 * (sum_sp_total + sum_lab)   # sum softplus(+labeled)
    sum_sp_neg = 0.5 * (sum_sp_total - sum_lab)   # sum softplus(-labeled)
    mean_conf = sum_conf / n_conf
    y_conf_pos = sum_sp_neg / n_lab               # SoftMarginLoss(labeled, +1)
    y_conf_neg = sum_sp_pos / n_lab               # SoftMarginLoss(labeled, -1)
    return mean_conf * y_conf_pos + (1.0 - mean_conf) * y_conf_neg


def _tile_sums(conf_f32, lab_f32):
    """Per-tile scalar sums: sum(conf), sum(labeled), sum(softplus(x)+softplus(-x))."""
    abs_lab = jnp.abs(lab_f32)
    sp_total = abs_lab + 2.0 * jnp.log1p(jnp.exp(-abs_lab))  # softplus(x)+softplus(-x)
    return jnp.sum(conf_f32), jnp.sum(lab_f32), jnp.sum(sp_total)


# --------------------------------------------------------------------------- kernels
def _pnloss_single_kernel(conf_ref, lab_ref, out_ref, *,
                          n_conf, n_lab, pad_sp_correction):
    """Single-step path: whole problem in one VMEM tile per operand."""
    s_conf, s_lab, s_sp = _tile_sums(conf_ref[...].astype(jnp.float32),
                                     lab_ref[...].astype(jnp.float32))
    out_ref[0] = _finalize(s_conf, s_lab, s_sp,
                           n_conf=n_conf, n_lab=n_lab,
                           pad_sp_correction=pad_sp_correction)


def _pnloss_partial_kernel(conf_ref, lab_ref, conf_out, lab_out, sp_out):
    """Tiled path: each grid step reduces its block to three scalars and writes them
    (broadcast into a lane-dense (1,8,128) output block -> unmasked stores)."""
    s_conf, s_lab, s_sp = _tile_sums(conf_ref[...].astype(jnp.float32),
                                     lab_ref[...].astype(jnp.float32))
    blk = (1, SUBLANES, LANES)
    conf_out[...] = jnp.full(blk, s_conf, jnp.float32)
    lab_out[...] = jnp.full(blk, s_lab, jnp.float32)
    sp_out[...] = jnp.full(blk, s_sp, jnp.float32)


# --------------------------------------------------------------------------- wrapper
def _pad_reshape(flat, total_rows):
    """Zero-pad a 1-D array to total_rows*LANES elements and reshape to (rows, LANES)."""
    n = flat.shape[0]
    n_pad = total_rows * LANES - n
    if n_pad:
        flat = jnp.pad(flat, (0, n_pad))
    return flat.reshape(total_rows, LANES), n_pad


def pn_loss(conf, labeled, *, block_rows=1024,
            single_shot_max_rows=_SINGLE_SHOT_MAX_ROWS):
    """Pallas TPU implementation of PNLoss.forward(conf, labeled) -> scalar f32."""
    n_conf = float(conf.size)
    n_lab = float(labeled.size)

    conf_flat = conf.reshape(-1)
    lab_flat = labeled.reshape(-1)

    rows_c = _ceil_div(conf_flat.shape[0], LANES)
    rows_l = _ceil_div(lab_flat.shape[0], LANES)

    # ------------------------------------------------------------------ fast path
    if rows_c <= single_shot_max_rows and rows_l <= single_shot_max_rows:
        conf2, _ = _pad_reshape(conf_flat, _ceil_div(rows_c, SUBLANES) * SUBLANES)
        lab2, n_pad_lab = _pad_reshape(lab_flat, _ceil_div(rows_l, SUBLANES) * SUBLANES)
        kernel = functools.partial(
            _pnloss_single_kernel, n_conf=n_conf, n_lab=n_lab,
            pad_sp_correction=2.0 * _LOG2 * float(n_pad_lab))
        out = pl.pallas_call(
            kernel,
            out_shape=jax.ShapeDtypeStruct((1,), jnp.float32),
            grid_spec=pltpu.PrefetchScalarGridSpec(
                num_scalar_prefetch=0,
                grid=(1,),
                in_specs=[
                    pl.BlockSpec(conf2.shape, lambda i: (0, 0)),
                    pl.BlockSpec(lab2.shape, lambda i: (0, 0)),
                ],
                out_specs=pl.BlockSpec(memory_space=pltpu.SMEM),
            ),
            compiler_params=pltpu.CompilerParams(
                dimension_semantics=("arbitrary",),
            ),
        )(conf2, lab2)
        return out[0]

    # ------------------------------------------------------------------ tiled path
    # Large inputs: lane-dense 512 KiB/operand blocks (double-buffered by Pallas),
    # per-block scalar partials written to tiny output blocks, combined in XLA.
    # "parallel" grid axis -> blocks shard across both TensorCores on v7x.
    rows_target = _ceil_div(max(rows_c, rows_l), block_rows) * block_rows
    conf2, _ = _pad_reshape(conf_flat, rows_target)
    lab2, n_pad_lab = _pad_reshape(lab_flat, rows_target)
    nblk = rows_target // block_rows

    part_shape = jax.ShapeDtypeStruct((nblk, SUBLANES, LANES), jnp.float32)
    part_spec = pl.BlockSpec((1, SUBLANES, LANES), lambda i: (i, 0, 0))

    conf_p, lab_p, sp_p = pl.pallas_call(
        _pnloss_partial_kernel,
        out_shape=(part_shape, part_shape, part_shape),
        grid_spec=pltpu.PrefetchScalarGridSpec(
            num_scalar_prefetch=0,
            grid=(nblk,),
            in_specs=[
                pl.BlockSpec((block_rows, LANES), lambda i: (i, 0)),
                pl.BlockSpec((block_rows, LANES), lambda i: (i, 0)),
            ],
            out_specs=[part_spec, part_spec, part_spec],
        ),
        compiler_params=pltpu.CompilerParams(
            dimension_semantics=("parallel",),
        ),
    )(conf2, lab2)

    # Tiny combine + normalization (one scalar per block) as plain XLA.
    sum_conf = jnp.sum(conf_p[:, 0, 0])
    sum_lab = jnp.sum(lab_p[:, 0, 0])
    sum_sp = jnp.sum(sp_p[:, 0, 0])
    return _finalize(sum_conf, sum_lab, sum_sp,
                     n_conf=n_conf, n_lab=n_lab,
                     pad_sp_correction=2.0 * _LOG2 * float(n_pad_lab))


def _pn_loss_ref(conf, labeled):
    """Pure-JAX reference matching the PyTorch module."""
    lab = labeled.astype(jnp.float32)
    conf = conf.astype(jnp.float32)
    y_pos = jnp.mean(jax.nn.softplus(-lab))   # SoftMarginLoss(labeled, +1)
    y_neg = jnp.mean(jax.nn.softplus(lab))    # SoftMarginLoss(labeled, -1)
    return jnp.mean(conf * y_pos + (1.0 - conf) * y_neg)


if __name__ == "__main__":
    key = jax.random.PRNGKey(0)
    k_conf, k_lab = jax.random.split(key)

    B, C, H, W = 2, 4, 16, 16                     # NCHW, total = 2048 = 16 * 128
    conf = jax.random.uniform(k_conf, (B, C, H, W), dtype=jnp.float32)   # confidences
    labeled = jax.random.normal(k_lab, (B, C, H, W), dtype=jnp.float32)  # raw scores

    ref = jax.block_until_ready(_pn_loss_ref(conf, labeled))

    # Fast (single-shot) path — the path the spec-sized input actually takes.
    out_fast = jax.block_until_ready(pn_loss(conf, labeled))
    assert jnp.allclose(out_fast, ref, rtol=1e-5, atol=1e-6), (out_fast, ref)

    # Tiled (parallel partial-sum) path, forced on the same small input.
    out_tiled = jax.block_until_ready(
        pn_loss(conf, labeled, block_rows=8, single_shot_max_rows=0))
    assert jnp.allclose(out_tiled, ref, rtol=1e-5, atol=1e-6), (out_tiled, ref)

    print("KERNEL_OK")
</pallas_src>

<mosaic_0001>
module attributes {stable_mosaic.version = 11 : i64} {
  func.func @_pnloss_single_kernel(%arg0: i32, %arg1: memref<16x128xf32, #tpu.memory_space<vmem>>, %arg2: memref<16x128xf32, #tpu.memory_space<vmem>>, %arg3: memref<1xf32, #tpu.memory_space<smem>>) attributes {dimension_semantics = [#tpu.dimension_semantics<arbitrary>], iteration_bounds = array<i64: 1>, scalar_prefetch = 0 : i64, scratch_operands = 0 : i64, tpu.core_type = #tpu.core_type<tc>, window_params = [{pipeline_mode = #tpu.pipeline_mode<synchronous>, transform_indices = @transform_0, window_bounds = array<i64: 16, 128>}, {pipeline_mode = #tpu.pipeline_mode<synchronous>, transform_indices = @transform_1, window_bounds = array<i64: 16, 128>}, {transform_indices = @transform_2, window_bounds = array<i64: 1>}]} {
    %c0 = arith.constant 0 : index
    %c0_0 = arith.constant 0 : index
    %0 = vector.load %arg1[%c0, %c0_0] : memref<16x128xf32, #tpu.memory_space<vmem>>, vector<16x128xf32>
    %c0_1 = arith.constant 0 : index
    %c0_2 = arith.constant 0 : index
    %1 = vector.load %arg2[%c0_1, %c0_2] : memref<16x128xf32, #tpu.memory_space<vmem>>, vector<16x128xf32>
    %2 = math.absf %1 : vector<16x128xf32>
    %cst = arith.constant 0.000000e+00 : f32
    %3 = vector.broadcast %cst : f32 to vector<16x128xf32>
    %4 = arith.subf %3, %2 : vector<16x128xf32>
    %5 = math.exp %4 : vector<16x128xf32>
    %6 = math.log1p %5 : vector<16x128xf32>
    %cst_3 = arith.constant 2.000000e+00 : f32
    %7 = vector.broadcast %cst_3 : f32 to vector<16x128xf32>
    %8 = arith.mulf %7, %6 : vector<16x128xf32>
    %9 = arith.addf %2, %8 : vector<16x128xf32>
    %10 = vector.shape_cast %0 : vector<16x128xf32> to vector<1x16x128xf32>
    %cst_4 = arith.constant dense<0.000000e+00> : vector<1xf32>
    %11 = vector.multi_reduction <add>, %10, %cst_4 [1, 2] : vector<1x16x128xf32> to vector<1xf32>
    %12 = vector.shape_cast %11 : vector<1xf32> to vector<1x1x1xf32>
    %13 = vector.extract %12[0, 0, 0] : f32 from vector<1x1x1xf32>
    %14 = vector.shape_cast %1 : vector<16x128xf32> to vector<1x16x128xf32>
    %cst_5 = arith.constant dense<0.000000e+00> : vector<1xf32>
    %15 = vector.multi_reduction <add>, %14, %cst_5 [1, 2] : vector<1x16x128xf32> to vector<1xf32>
    %16 = vector.shape_cast %15 : vector<1xf32> to vector<1x1x1xf32>
    %17 = vector.extract %16[0, 0, 0] : f32 from vector<1x1x1xf32>
    %18 = vector.shape_cast %9 : vector<16x128xf32> to vector<1x16x128xf32>
    %cst_6 = arith.constant dense<0.000000e+00> : vector<1xf32>
    %19 = vector.multi_reduction <add>, %18, %cst_6 [1, 2] : vector<1x16x128xf32> to vector<1xf32>
    %20 = vector.shape_cast %19 : vector<1xf32> to vector<1x1x1xf32>
    %21 = vector.extract %20[0, 0, 0] : f32 from vector<1x1x1xf32>
    %cst_7 = arith.constant 0.000000e+00 : f32
    %22 = arith.subf %21, %cst_7 : f32
    %23 = arith.addf %22, %17 : f32
    %cst_8 = arith.constant 5.000000e-01 : f32
    %24 = arith.mulf %cst_8, %23 : f32
    %25 = arith.subf %22, %17 : f32
    %cst_9 = arith.constant 5.000000e-01 : f32
    %26 = arith.mulf %cst_9, %25 : f32
    %cst_10 = arith.constant 2.048000e+03 : f32
    %27 = arith.divf %13, %cst_10 : f32
    %cst_11 = arith.constant 2.048000e+03 : f32
    %28 = arith.divf %26, %cst_11 : f32
    %cst_12 = arith.constant 2.048000e+03 : f32
    %29 = arith.divf %24, %cst_12 : f32
    %30 = arith.mulf %27, %28 : f32
    %cst_13 = arith.constant 1.000000e+00 : f32
    %31 = arith.subf %cst_13, %27 : f32
    %32 = arith.mulf %31, %29 : f32
    %33 = arith.addf %30, %32 : f32
    %c0_14 = arith.constant 0 : index
    %34 = memref.load %arg3[%c0_14] : memref<1xf32, #tpu.memory_space<smem>>
    memref.store %33, %arg3[%c0_14] : memref<1xf32, #tpu.memory_space<smem>>
    return
  }
  func.func @transform_0(%arg0: i32) -> (i32, i32) {
    %c0_i32 = arith.constant 0 : i32
    %c0_i32_0 = arith.constant 0 : i32
    %c0_i32_1 = arith.constant 0 : i32
    return %c0_i32, %c0_i32_0 : i32, i32
  }
  func.func @transform_1(%arg0: i32) -> (i32, i32) {
    %c0_i32 = arith.constant 0 : i32
    %c0_i32_0 = arith.constant 0 : i32
    %c0_i32_1 = arith.constant 0 : i32
    return %c0_i32, %c0_i32_0 : i32, i32
  }
  func.func @transform_2(%arg0: i32) -> i32 {
    %c0_i32 = arith.constant 0 : i32
    %c0_i32_0 = arith.constant 0 : i32
    return %c0_i32 : i32
  }
}

</mosaic_0001>

<llo_original>
// kernel: tpu_custom_call.1
$region0: #{tpu_custom_call.1}
  #allocation0 [shape = 'u32[]', space=smem, size = 0x4, offset = 0x4, fixed_abs, tag = 'smem constant byte address 0x4 - core index']
  #allocation1 [shape = 'u32[72,128]{1,0:T(1,128)}', space=vmem, size = 0x9000, scoped, tag = 'internal scratch']
  %s0 = inlined_call_operand.hbm [shape: f32[16,128], index: 0, kind: input, shape index: {}]
  %s1 = inlined_call_operand.hbm [shape: f32[16,128], index: 1, kind: input, shape index: {}]
  %s2 = inlined_call_operand.hbm [shape: f32[1], index: 2, kind: output, shape index: {}]
  %s3 = sld [smem:[#allocation0]]
  $region26: #{tpu_custom_call.1} parent=0
    _
  %s5 = ssub.s32 1, %s3
  %s6 = scalar_select 0, %s5, %s3
  $region1: #{tpu_custom_call.1} parent=0
    #allocation2 [shape = 'u8[8192]{0}', space=vmem, size = 0x2000, scoped, tag = 'input window, operand 0, single buffered']
    #allocation3 [shape = 's32[1]{0}', space=sflag, size = 0x4, scoped, tag = 'scoped memory for tpu_custom_call.1']
    #allocation4 [shape = 's32[1]{0}', space=sflag, size = 0x4, scoped, tag = 'scoped memory for tpu_custom_call.1']
    #allocation5 [shape = 'u8[8192]{0}', space=vmem, size = 0x2000, scoped, tag = 'input window, operand 1, single buffered']
    #allocation6 [shape = 's32[1]{0}', space=sflag, size = 0x4, scoped, tag = 'scoped memory for tpu_custom_call.1']
    #allocation7 [shape = 'u8[512]{0}', space=smem, size = 0x200, scoped, tag = 'output window, operand 0, single buffered']
    %7 = vsyncpa [#allocation3], 0
    %8 = vsyncpa [#allocation6], 0
    %9 = vsyncpa [#allocation4], 0
    // Predicated region
    $region2: #{tpu_custom_call.1} parent=1 // pred_check
      _
    $region3: #{tpu_custom_call.1} parent=1 // pred_check_branch
      %11 = sbr.rel (0) target = $region5
    $region4: #{tpu_custom_call.1} parent=1 // pred_region
      %13 = vsyncadd [#allocation3], 0
      %s14 = sshll.u32 %s0, 4
      %s15 = int_to_ptr.hbm [resolvable:$true] %s14
      %s16 = sshll.u32 [#allocation2], 4
      %s17 = int_to_ptr.vmem [resolvable:$true] %s16
      %22 = dma.hbm_to_vmem [thread:$0]  %s15, 256, %s17, [#allocation3], 128, 128, 8
    $region5: #{tpu_custom_call.1} parent=1 // pred_fallthru
      _
    // Predicated region
    $region6: #{tpu_custom_call.1} parent=1 // pred_check
      _
    $region7: #{tpu_custom_call.1} parent=1 // pred_check_branch
      %24 = sbr.rel (0) target = $region9
    $region8: #{tpu_custom_call.1} parent=1 // pred_region
      %26 = vsyncadd [#allocation6], 0
      %s27 = sshll.u32 %s1, 4
      %s28 = int_to_ptr.hbm [resolvable:$true] %s27
      %s29 = sshll.u32 [#allocation5], 4
      %s30 = int_to_ptr.vmem [resolvable:$true] %s29
      %35 = dma.hbm_to_vmem [thread:$0]  %s28, 256, %s30, [#allocation6], 128, 128, 8
    $region9: #{tpu_custom_call.1} parent=1 // pred_fallthru
      _
    // Predicated region
    $region10: #{tpu_custom_call.1} parent=1 // pred_check
      _
    $region11: #{tpu_custom_call.1} parent=1 // pred_check_branch
      %37 = sbr.rel (0) target = $region13
    $region12: #{tpu_custom_call.1} parent=1 // pred_region
      %39 = dma.done [#allocation3], 256
    $region13: #{tpu_custom_call.1} parent=1 // pred_fallthru
      _
    // Predicated region
    $region14: #{tpu_custom_call.1} parent=1 // pred_check
      _
    $region15: #{tpu_custom_call.1} parent=1 // pred_check_branch
      %41 = sbr.rel (0) target = $region17
    $region16: #{tpu_custom_call.1} parent=1 // pred_region
      %43 = dma.done [#allocation6], 256
    $region17: #{tpu_custom_call.1} parent=1 // pred_fallthru
      _
    %v44 = vld [vmem:[#allocation2] sm:$0xff]
    %v45 = vld [vmem:[#allocation2 + $0x8] sm:$0xff]
    %v46 = vld [vmem:[#allocation5] sm:$0xff]
    %v47 = vld [vmem:[#allocation5 + $0x8] sm:$0xff]
    %v48 = vand.u32 2147483647, %v46
    %v49 = vand.u32 2147483647, %v47
    %v50 = vsub.f32 0.0, %v48
    %v51 = vsub.f32 0.0, %v49
    %v52 = vmul.f32 %v50, 1.442695
    %v53 = vpow.pop %v52
    %v54 = vmul.f32 %v51, 1.442695
    %v55 = vpow.pop %v54
    %v56 = vadd.f32 %v53, 1.0
    %v57 = vlog2.pop %v56
    %v58 = vmul.f32 %v57, 0.6931472
    %v59 = vmul.f32 -0.5, %v53
    %v60 = vadd.f32 %v59, 1.0
    %v61 = vmul.f32 %v60, %v53
    %v62 = vand.u32 2147483647, %v53
    %vm63 = vcmp.lt.f32.partialorder %v62, 0.0004427343
    %v64 = vsel %vm63, %v61, %v58
    %v65 = vadd.f32 %v55, 1.0
    %v66 = vlog2.pop %v65
    %v67 = vmul.f32 %v66, 0.6931472
    %v68 = vmul.f32 -0.5, %v55
    %v69 = vadd.f32 %v68, 1.0
    %v70 = vmul.f32 %v69, %v55
    %v71 = vand.u32 2147483647, %v55
    %vm72 = vcmp.lt.f32.partialorder %v71, 0.0004427343
    %v73 = vsel %vm72, %v70, %v67
    %v74 = vmul.f32 %v64, 2.0
    %v75 = vmul.f32 %v73, 2.0
    %v76 = vadd.f32 %v48, %v74
    %v77 = vadd.f32 %v49, %v75
    %v78 = vadd.f32 %v44, %v45
    %79 = vadd.xlane.f32.xlu0 %v78
    %v80 = vpop.xlane.xlu0 %79
    %v81 = vrot.slane %v80, 4
    %v82 = vadd.f32 %v80, %v81
    %v83 = vrot.slane %v82, 2
    %v84 = vadd.f32 %v82, %v83
    %v85 = vrot.slane %v84, 1
    %v86 = vadd.f32 %v84, %v85
    %s87 = vtos %v86
    %v88 = vadd.f32 %v46, %v47
    %89 = vadd.xlane.f32.xlu0 %v88
    %v90 = vpop.xlane.xlu0 %89
    %v91 = vrot.slane %v90, 4
    %v92 = vadd.f32 %v90, %v91
    %v93 = vrot.slane %v92, 2
    %v94 = vadd.f32 %v92, %v93
    %v95 = vrot.slane %v94, 1
    %v96 = vadd.f32 %v94, %v95
    %s97 = vtos %v96
    %v98 = vadd.f32 %v76, %v77
    %99 = vadd.xlane.f32.xlu0 %v98
    %v100 = vpop.xlane.xlu0 %99
    %v101 = vrot.slane %v100, 4
    %v102 = vadd.f32 %v100, %v101
    %v103 = vrot.slane %v102, 2
    %v104 = vadd.f32 %v102, %v103
    %v105 = vrot.slane %v104, 1
    %v106 = vadd.f32 %v104, %v105
    %s107 = vtos %v106
    %s108 = sadd.f32 %s107, %s97
    %s109 = smul.f32 %s108, 0.5
    %s110 = ssub.f32 %s107, %s97
    %s111 = smul.f32 %s110, 0.5
    %v112 = vrcp.pop 2048.0
    %v113 = vmul.f32 2048.0, %v112
    %v114 = vsub.f32 1.0, %v113
    %v115 = vmul.f32 %v112, %v114
    %v116 = vadd.f32 %v112, %v115
    %vm117 = vweird.f32 %v112
    %v118 = vsel %vm117, %v112, %v116
    %s119 = vtos %v118
    %s120 = smul.f32 %s87, %s119
    %v121 = vrcp.pop 2048.0
    %v122 = vmul.f32 2048.0, %v121
    %v123 = vsub.f32 1.0, %v122
    %v124 = vmul.f32 %v121, %v123
    %v125 = vadd.f32 %v121, %v124
    %vm126 = vweird.f32 %v121
    %v127 = vsel %vm126, %v121, %v125
    %s128 = vtos %v127
    %s129 = smul.f32 %s111, %s128
    %v130 = vrcp.pop 2048.0
    %v131 = vmul.f32 2048.0, %v130
    %v132 = vsub.f32 1.0, %v131
    %v133 = vmul.f32 %v130, %v132
    %v134 = vadd.f32 %v130, %v133
    %vm135 = vweird.f32 %v130
    %v136 = vsel %vm135, %v130, %v134
    %s137 = vtos %v136
    %s138 = smul.f32 %s109, %s137
    %s139 = smul.f32 %s120, %s129
    %s140 = ssub.f32 1.0, %s120
    %s141 = smul.f32 %s140, %s138
    %s142 = sadd.f32 %s139, %s141
    %s143 = scalar_lea.smem [#allocation7], 0
    %144 = sst [smem:[%s143]] %s142
    // Predicated region
    $region18: #{tpu_custom_call.1} parent=1 // pred_check
      _
    $region19: #{tpu_custom_call.1} parent=1 // pred_check_branch
      %146 = sbr.rel (0) target = $region21
    $region20: #{tpu_custom_call.1} parent=1 // pred_region
      %148 = vsyncadd [#allocation4], 0
      %s150 = sshll.u32 %s2, 4
      %s151 = int_to_ptr.hbm [resolvable:$true] %s150
      %153 = dma.smem_to_hbm [#allocation7], 16, %s151, [#allocation4]
    $region21: #{tpu_custom_call.1} parent=1 // pred_fallthru
      _
    // Predicated region
    $region22: #{tpu_custom_call.1} parent=1 // pred_check
      _
    $region23: #{tpu_custom_call.1} parent=1 // pred_check_branch
      %155 = sbr.rel (0) target = $region25
    $region24: #{tpu_custom_call.1} parent=1 // pred_region
      %157 = dma.done [#allocation4], 16
    $region25: #{tpu_custom_call.1} parent=1 // pred_fallthru
      _
    %158 = sfence
    %159 = vsyncpa [#allocation3], 1
    %160 = vsyncpa [#allocation6], 1
    %161 = vsyncpa [#allocation4], 1

</llo_original>
